<compile_context>
chip_gen: v7x
topology: tpu7x:2x2x1
jax: 0.10.0
libtpu: 0.0.40
codegen_flags: <defaults>
</compile_context>

<pallas_src>
import jax
import jax.numpy as jnp
from jax.experimental import pallas as pl
from jax.experimental.pallas import tpu as pltpu


def _round_up(a, b):
    return (a + b - 1) // b * b


def _conv_stats_kernel(p_ref, w_ref, sum_ref, sq_ref):
    """Pass 1: per-channel sum and sum-of-squares of (patches @ W), f32 accumulate."""
    i = pl.program_id(1)                      # "arbitrary" reduction axis (per-core tiles)

    @pl.when(i == 0)
    def _():
        sum_ref[...] = jnp.zeros_like(sum_ref)
        sq_ref[...] = jnp.zeros_like(sq_ref)

    # No bias add / no row mask: bias cancels under training-mode BN, and M-padded
    # rows are exact zeros so they contribute nothing to the statistics.
    y = jnp.dot(p_ref[...], w_ref[...], preferred_element_type=jnp.float32)

    # Stripe partials across the 8 accumulator sublanes (row r accumulates input rows
    # with row % 8 == r): pure (8, C) tile adds, no 1->8 broadcast, shorter f32 chains.
    tm, c = y.shape
    y3 = y.reshape(tm // 8, 8, c)
    sum_ref[...] += jnp.sum(y3, axis=0)
    sq_ref[...] += jnp.sum(y3 * y3, axis=0)


def _conv_bn_lrelu_kernel(p_ref, w_ref, scale_ref, shift_ref, o_ref):
    """Pass 2: recompute conv matmul, folded BN (one FMA) + LeakyReLU(0.2)."""
    z = jnp.dot(p_ref[...], w_ref[...], preferred_element_type=jnp.float32)
    z = z * scale_ref[...] + shift_ref[...]
    o_ref[...] = jnp.where(z > 0, z, 0.2 * z)


def _im2col(x, K, pad):
    """Host-side im2col glue (slices/reshapes only).  Row order: N-major, H_out, W_out;
    reduction order: C_in-major, then (kh, kw) — matches w.reshape(C_out, C_in*K*K)."""
    N, C_in, H, W = x.shape
    H_out = H + 2 * pad - K + 1
    W_out = W + 2 * pad - K + 1
    xp = jnp.pad(x, ((0, 0), (0, 0), (pad, pad), (pad, pad)))
    cols = []
    for kh in range(K):
        for kw in range(K):
            cols.append(xp[:, :, kh:kh + H_out, kw:kw + W_out])   # (N, C_in, H_out, W_out)
    patches = jnp.stack(cols, axis=2)                             # (N, C_in, K*K, H_out, W_out)
    patches = patches.reshape(N, C_in * K * K, H_out, W_out)
    patches = patches.transpose(0, 2, 3, 1).reshape(N * H_out * W_out, C_in * K * K)
    return patches, H_out, W_out


def conv_bn_lrelu(x, w, b, gamma, beta, *, ker=4, pad=2):
    """x: (N, C_in, H, W) f32 NCHW; w: (C_out, C_in, K, K); b/gamma/beta: (C_out,)."""
    # Conv bias is accepted for API parity but cancels exactly under training-mode
    # BatchNorm (it only shifts the batch mean, which BN subtracts), so it is unused.
    del b

    N, C_in, H, W = x.shape
    C_out = w.shape[0]
    K = ker
    eps = 1e-5

    # Cast to bf16 BEFORE im2col so the K*K-expanded patches array is bf16, not f32.
    patches, H_out, W_out = _im2col(x.astype(jnp.bfloat16), K, pad)
    M = N * H_out * W_out
    Kdim = C_in * K * K

    # Lane-dense output channels.  Do not pad a small contraction dim to 128: a
    # full-extent (tm, Kdim) block is legal and avoids 2x wasted bytes/flops.
    C_pad = _round_up(C_out, 128)
    K_pad = _round_up(Kdim, 128) if Kdim >= 128 else _round_up(Kdim, 16)

    # Row tile: as large as VMEM allows (fewer grid steps, better HBM roofline) while
    # keeping the double-buffered per-step footprint under ~40 MiB so it also fits
    # v7x's 64 MiB physical VMEM.  Multiple of 256 keeps f32/bf16 tilings happy.
    n_split = 2                                      # leading "parallel" axis (v7x megacore)
    tm = min(1024, max(256, _round_up((M + n_split - 1) // n_split, 256)))
    vmem_budget = 40 * 1024 * 1024
    while tm > 256 and 2 * (tm * K_pad * 2 + tm * C_pad * 4) + K_pad * C_pad * 2 > vmem_budget:
        tm //= 2
    M_pad = _round_up(M, n_split * tm)
    n_tiles = M_pad // tm
    n_half = n_tiles // n_split

    patches_p = jnp.pad(patches, ((0, M_pad - M), (0, K_pad - Kdim)))        # bf16
    w2d = jnp.pad(w.reshape(C_out, Kdim).T,
                  ((0, K_pad - Kdim), (0, C_pad - C_out))).astype(jnp.bfloat16)
    gamma_p = jnp.pad(gamma, (0, C_pad - C_out)).astype(jnp.float32)
    beta_p = jnp.pad(beta, (0, C_pad - C_out)).astype(jnp.float32)

    vmem_limit = 48 * 1024 * 1024

    # ---------- pass 1: global per-channel sum / sum-of-squares of the conv output ----------
    sum_out, sq_out = pl.pallas_call(
        _conv_stats_kernel,
        out_shape=(
            jax.ShapeDtypeStruct((n_split * 8, C_pad), jnp.float32),
            jax.ShapeDtypeStruct((n_split * 8, C_pad), jnp.float32),
        ),
        grid=(n_split, n_half),
        in_specs=[
            pl.BlockSpec((tm, K_pad), lambda c, i: (c * n_half + i, 0)),
            pl.BlockSpec((K_pad, C_pad), lambda c, i: (0, 0)),
        ],
        out_specs=(
            pl.BlockSpec((8, C_pad), lambda c, i: (c, 0)),   # per-core resident accumulator
            pl.BlockSpec((8, C_pad), lambda c, i: (c, 0)),
        ),
        compiler_params=pltpu.CompilerParams(
            dimension_semantics=("parallel", "arbitrary"),   # stats accumulate across tiles
            vmem_limit_bytes=vmem_limit,
        ),
    )(patches_p, w2d)

    # Fold BN into one FMA: scale = gamma * rsqrt(var + eps); shift = beta - mean * scale.
    s1 = jnp.sum(sum_out, axis=0)                    # combine cores + sublane stripes
    s2 = jnp.sum(sq_out, axis=0)
    mean = s1 / M
    var = jnp.maximum(s2 / M - mean * mean, 0.0)     # biased var == training-mode BN
    scale = gamma_p * jax.lax.rsqrt(var + eps)
    shift = beta_p - mean * scale
    scale2d = scale.reshape(1, C_pad)
    shift2d = shift.reshape(1, C_pad)

    # ---------- pass 2: recompute conv (MXU headroom), fused BN + LeakyReLU ----------
    out_flat = pl.pallas_call(
        _conv_bn_lrelu_kernel,
        out_shape=jax.ShapeDtypeStruct((M_pad, C_pad), jnp.float32),
        grid=(n_tiles,),
        in_specs=[
            pl.BlockSpec((tm, K_pad), lambda i: (i, 0)),
            pl.BlockSpec((K_pad, C_pad), lambda i: (0, 0)),
            pl.BlockSpec((1, C_pad), lambda i: (0, 0)),
            pl.BlockSpec((1, C_pad), lambda i: (0, 0)),
        ],
        out_specs=pl.BlockSpec((tm, C_pad), lambda i: (i, 0)),
        compiler_params=pltpu.CompilerParams(
            dimension_semantics=("parallel",),               # megacore-sharded on v7x
            vmem_limit_bytes=vmem_limit,
        ),
    )(patches_p, w2d, scale2d, shift2d)

    # Kernel-native layout is channels-last, lane-dense.  The slice + NCHW transpose is
    # one XLA pass done only for PyTorch parity; an NHWC consumer could skip it.
    out = out_flat[:M, :C_out].reshape(N, H_out, W_out, C_out).transpose(0, 3, 1, 2)
    return out


if __name__ == "__main__":
    key = jax.random.PRNGKey(0)
    N, C_in, H, W = 2, 4, 16, 16
    C_out, K, PAD = 8, 4, 2

    kx, kw, kb = jax.random.split(key, 3)
    x = jax.random.normal(kx, (N, C_in, H, W), dtype=jnp.float32)
    fan_in = C_in * K * K
    bound = 1.0 / (fan_in ** 0.5)
    w = jax.random.uniform(kw, (C_out, C_in, K, K), minval=-bound, maxval=bound,
                           dtype=jnp.float32)
    b = jax.random.uniform(kb, (C_out,), minval=-bound, maxval=bound, dtype=jnp.float32)
    gamma = jnp.ones((C_out,), jnp.float32)   # BatchNorm2d weight init
    beta = jnp.zeros((C_out,), jnp.float32)   # BatchNorm2d bias init

    out = conv_bn_lrelu(x, w, b, gamma, beta, ker=K, pad=PAD)
    jax.block_until_ready(out)
    H_out = H + 2 * PAD - K + 1
    W_out = W + 2 * PAD - K + 1
    assert out.shape == (N, C_out, H_out, W_out)
    print("KERNEL_OK")
</pallas_src>

<mosaic_0001>
module attributes {stable_mosaic.version = 11 : i64} {
  func.func @_conv_stats_kernel(%arg0: i32, %arg1: i32, %arg2: memref<512x64xbf16, #tpu.memory_space<vmem>>, %arg3: memref<64x128xbf16, #tpu.memory_space<vmem>>, %arg4: memref<8x128xf32, #tpu.memory_space<vmem>>, %arg5: memref<8x128xf32, #tpu.memory_space<vmem>>) attributes {dimension_semantics = [#tpu.dimension_semantics<parallel>, #tpu.dimension_semantics<arbitrary>], iteration_bounds = array<i64: 2, 1>, scalar_prefetch = 0 : i64, scratch_operands = 0 : i64, tpu.core_type = #tpu.core_type<tc>, window_params = [{transform_indices = @transform_0, window_bounds = array<i64: 512, 64>}, {pipeline_mode = #tpu.pipeline_mode<synchronous>, transform_indices = @transform_1, window_bounds = array<i64: 64, 128>}, {transform_indices = @transform_2, window_bounds = array<i64: 8, 128>}, {transform_indices = @transform_3, window_bounds = array<i64: 8, 128>}]} {
    %c0_i32 = arith.constant 0 : i32
    %0 = arith.cmpi eq, %arg1, %c0_i32 : i32
    %1 = arith.extui %0 : i1 to i32
    %c0_i32_0 = arith.constant 0 : i32
    %2 = arith.cmpi ne, %1, %c0_i32_0 : i32
    scf.if %2 {
      %cst_14 = arith.constant 0.000000e+00 : f32
      %16 = vector.broadcast %cst_14 : f32 to vector<8x128xf32>
      %c0_15 = arith.constant 0 : index
      %c0_16 = arith.constant 0 : index
      %17 = vector.load %arg4[%c0_15, %c0_16] : memref<8x128xf32, #tpu.memory_space<vmem>>, vector<8x128xf32>
      tpu.vector_store %arg4[%c0_15, %c0_16], %16 {strides = array<i32>} : memref<8x128xf32, #tpu.memory_space<vmem>>, vector<8x128xf32>,
      %cst_17 = arith.constant 0.000000e+00 : f32
      %18 = vector.broadcast %cst_17 : f32 to vector<8x128xf32>
      %c0_18 = arith.constant 0 : index
      %c0_19 = arith.constant 0 : index
      %19 = vector.load %arg5[%c0_18, %c0_19] : memref<8x128xf32, #tpu.memory_space<vmem>>, vector<8x128xf32>
      tpu.vector_store %arg5[%c0_18, %c0_19], %18 {strides = array<i32>} : memref<8x128xf32, #tpu.memory_space<vmem>>, vector<8x128xf32>,
    } else {
    }
    %c0 = arith.constant 0 : index
    %c0_1 = arith.constant 0 : index
    %3 = vector.load %arg2[%c0, %c0_1] : memref<512x64xbf16, #tpu.memory_space<vmem>>, vector<512x64xbf16>
    %c0_2 = arith.constant 0 : index
    %c0_3 = arith.constant 0 : index
    %4 = vector.load %arg3[%c0_2, %c0_3] : memref<64x128xbf16, #tpu.memory_space<vmem>>, vector<64x128xbf16>
    %cst = arith.constant dense<0.000000e+00> : vector<512x128xf32>
    %5 = tpu.matmul %3, %4, %cst {dimension_numbers = #tpu.dot_dimension_numbers<[1], [0], [0], [1], [0, 0, 1, 1], [], []>} : vector<512x64xbf16>, vector<64x128xbf16>, vector<512x128xf32> -> vector<512x128xf32>
    %6 = vector.shape_cast %5 : vector<512x128xf32> to vector<64x8x128xf32>
    %c0_4 = arith.constant 0 : index
    %c0_5 = arith.constant 0 : index
    %7 = vector.load %arg4[%c0_4, %c0_5] : memref<8x128xf32, #tpu.memory_space<vmem>>, vector<8x128xf32>
    %cst_6 = arith.constant dense<0.000000e+00> : vector<8x128xf32>
    %8 = vector.multi_reduction <add>, %6, %cst_6 [0] : vector<64x8x128xf32> to vector<8x128xf32>
    %9 = arith.addf %7, %8 : vector<8x128xf32>
    %c0_7 = arith.constant 0 : index
    %c0_8 = arith.constant 0 : index
    %10 = vector.load %arg4[%c0_7, %c0_8] : memref<8x128xf32, #tpu.memory_space<vmem>>, vector<8x128xf32>
    tpu.vector_store %arg4[%c0_7, %c0_8], %9 {strides = array<i32>} : memref<8x128xf32, #tpu.memory_space<vmem>>, vector<8x128xf32>,
    %c0_9 = arith.constant 0 : index
    %c0_10 = arith.constant 0 : index
    %11 = vector.load %arg5[%c0_9, %c0_10] : memref<8x128xf32, #tpu.memory_space<vmem>>, vector<8x128xf32>
    %12 = arith.mulf %6, %6 : vector<64x8x128xf32>
    %cst_11 = arith.constant dense<0.000000e+00> : vector<8x128xf32>
    %13 = vector.multi_reduction <add>, %12, %cst_11 [0] : vector<64x8x128xf32> to vector<8x128xf32>
    %14 = arith.addf %11, %13 : vector<8x128xf32>
    %c0_12 = arith.constant 0 : index
    %c0_13 = arith.constant 0 : index
    %15 = vector.load %arg5[%c0_12, %c0_13] : memref<8x128xf32, #tpu.memory_space<vmem>>, vector<8x128xf32>
    tpu.vector_store %arg5[%c0_12, %c0_13], %14 {strides = array<i32>} : memref<8x128xf32, #tpu.memory_space<vmem>>, vector<8x128xf32>,
    return
  }
  func.func @transform_0(%arg0: i32, %arg1: i32) -> (i32, i32) {
    %c1_i32 = arith.constant 1 : i32
    %0 = arith.muli %arg0, %c1_i32 : i32
    %1 = arith.addi %0, %arg1 : i32
    %c0_i32 = arith.constant 0 : i32
    %c0_i32_0 = arith.constant 0 : i32
    return %1, %c0_i32 : i32, i32
  }
  func.func @transform_1(%arg0: i32, %arg1: i32) -> (i32, i32) {
    %c0_i32 = arith.constant 0 : i32
    %c0_i32_0 = arith.constant 0 : i32
    %c0_i32_1 = arith.constant 0 : i32
    return %c0_i32, %c0_i32_0 : i32, i32
  }
  func.func @transform_2(%arg0: i32, %arg1: i32) -> (i32, i32) {
    %c0_i32 = arith.constant 0 : i32
    %c0_i32_0 = arith.constant 0 : i32
    return %arg0, %c0_i32 : i32, i32
  }
  func.func @transform_3(%arg0: i32, %arg1: i32) -> (i32, i32) {
    %c0_i32 = arith.constant 0 : i32
    %c0_i32_0 = arith.constant 0 : i32
    return %arg0, %c0_i32 : i32, i32
  }
}

</mosaic_0001>

<llo_original>
// kernel: tpu_custom_call.1
$region0: #{tpu_custom_call.1}
  #allocation0 [shape = 'u32[]', space=smem, size = 0x4, offset = 0x4, fixed_abs, tag = 'smem constant byte address 0x4 - core index']
  #allocation1 [shape = 'u32[144,128]{1,0:T(1,128)}', space=vmem, size = 0x12000, scoped, tag = 'internal scratch']
  %s0 = inlined_call_operand.vmem [shape: bf16[1024,64], index: 0, kind: input, shape index: {}]
  %s1 = inlined_call_operand.vmem [shape: bf16[64,128], index: 1, kind: input, shape index: {}]
  %s2 = inlined_call_operand.hbm [shape: f32[16,128], index: 2, kind: output, shape index: {0}]
  %s3 = inlined_call_operand.hbm [shape: f32[16,128], index: 3, kind: output, shape index: {1}]
  %4 = xla_tuple %s2, %s3
  %s5 = sld [smem:[#allocation0]]
  $region53: #{tpu_custom_call.1} parent=0
    _
  %s7 = ssub.s32 1, %s5
  %s8 = scalar_select 0, %s7, %s5
  $region1: #{tpu_custom_call.1} parent=0
    #allocation2 [shape = 'u8[8192]{0}', space=vmem, size = 0x2000, scoped, tag = 'output window, operand 0']
    #allocation3 [shape = 's32[2]{0}', space=sflag, size = 0x8, scoped, tag = 'scoped memory for tpu_custom_call.1']
    #allocation4 [shape = 'u8[8192]{0}', space=vmem, size = 0x2000, scoped, tag = 'output window, operand 1']
    #allocation5 [shape = 's32[2]{0}', space=sflag, size = 0x8, scoped, tag = 'scoped memory for tpu_custom_call.1']
    %9 = vsyncpa [#allocation3], 0
    %s10 = scalar_lea.sflag [#allocation3], 1
    %11 = vsyncpa %s10, 0
    %12 = vsyncpa [#allocation5], 0
    %s13 = scalar_lea.sflag [#allocation5], 1
    %14 = vsyncpa %s13, 0
    loop: start=0, step=1, limit=4
    $region2: #{tpu_custom_call.1} parent=1 // loop_pre_header
      _
    $region3: #{tpu_custom_call.1} parent=1 // loop_header
      %s16 = sphi 0, %s20
      %p17 = scmp.ge.s32.totalorder %s16, 4
      %s23 = sphi 0, %s35
      %s24 = sphi 0, %s31
      %s25 = sphi 0, %s23
      %s26 = sphi 0, %s24
      %s27 = sphi 0, %s25
      %s28 = sphi 0, %s26
      %s40 = sphi 0, %s42
      %s43 = sphi 0, %s40
      %s44 = sphi 0, %s43
      %s60 = sphi 0, %s44
      %s64 = sphi 0, %s64
      %s66 = sphi 0, %s64
      %s67 = sphi 0, %s66
      %s81 = sphi 0, %s67
      %s87 = sphi 0, %s89
      %s90 = sphi 0, %s87
      %s91 = sphi 0, %s90
      %s107 = sphi 0, %s91
      %s113 = sphi 0, %s115
      %s116 = sphi 0, %s113
      %s117 = sphi 0, %s116
      %s133 = sphi 0, %s117
    $region4: #{tpu_custom_call.1} parent=1 // loop_header_branch
      %19 = sbr.rel (%p17) target = $region8
    $region5: #{tpu_custom_call.1} parent=1 // loop_body
      %s21 = ssub.s32 %s16, 1
      %s22 = ssub.s32 %s16, 2
      %s29 = sadd.s32 1, %s24
      %p30 = scmp.ge.s32.totalorder %s29, 1
      %s31 = scalar_select %p30, 0, %s29
      %s32 = sadd.s32 1, %s23
      %s33 = scalar_select %p30, %s32, %s23
      %p34 = scmp.ge.s32.totalorder %s33, 2
      %s35 = scalar_select %p34, 0, %s33
      %s36 = sadd.s32 %s23, %s24
      %s37 = sadd.s32 %s35, %s31
      %s38 = ssub.s32 %s36, %s37
      %p39 = scmp.eq.s32.totalorder %s38, 0
      %s41 = sadd.s32 %s40, 1
      %s42 = scalar_select %p39, %s40, %s41
      %p45 = pneg %p39
      %p46 = scmp.eq.s32.totalorder %s16, 1
      %p47 = por %p45, %p46
      %p48 = scmp.ne.s32.totalorder %s40, %s43
      %p49 = scmp.eq.s32.totalorder %s16, 0
      %p50 = por %p48, %p49
      %p51 = scmp.ne.s32.totalorder %s40, %s43
      %p52 = scmp.eq.s32.totalorder %s21, 1
      %p53 = por %p51, %p52
      %p54 = scmp.ne.s32.totalorder %s43, %s44
      %p55 = scmp.eq.s32.totalorder %s21, 0
      %p56 = por %p54, %p55
      %p57 = scmp.ne.s32.totalorder %s43, %s44
      %p58 = scmp.eq.s32.totalorder %s22, 1
      %p59 = por %p57, %p58
      %p61 = scmp.ne.s32.totalorder %s44, %s60
      %p62 = scmp.eq.s32.totalorder %s22, 0
      %p63 = por %p61, %p62
      %s65 = sadd.s32 %s64, 1
      %p68 = scmp.eq.s32.totalorder %s16, 1
      %p69 = scmp.ne.s32.totalorder %s64, %s66
      %p70 = scmp.eq.s32.totalorder %s16, 0
      %p71 = por %p69, %p70
      %p72 = scmp.ne.s32.totalorder %s64, %s66
      %p73 = scmp.eq.s32.totalorder %s21, 1
      %p74 = por %p72, %p73
      %p75 = scmp.ne.s32.totalorder %s66, %s67
      %p76 = scmp.eq.s32.totalorder %s21, 0
      %p77 = por %p75, %p76
      %p78 = scmp.ne.s32.totalorder %s66, %s67
      %p79 = scmp.eq.s32.totalorder %s22, 1
      %p80 = por %p78, %p79
      %p82 = scmp.ne.s32.totalorder %s67, %s81
      %p83 = scmp.eq.s32.totalorder %s22, 0
      %p84 = por %p82, %p83
      %s85 = ssub.s32 %s23, %s35
      %p86 = scmp.eq.s32.totalorder %s85, 0
      %s88 = sadd.s32 %s87, 1
      %s89 = scalar_select %p86, %s87, %s88
      %p92 = pneg %p86
      %p93 = scmp.eq.s32.totalorder %s16, 1
      %p94 = por %p92, %p93
      %p95 = scmp.ne.s32.totalorder %s87, %s90
      %p96 = scmp.eq.s32.totalorder %s16, 0
      %p97 = por %p95, %p96
      %p98 = scmp.ne.s32.totalorder %s87, %s90
      %p99 = scmp.eq.s32.totalorder %s21, 1
      %p100 = por %p98, %p99
      %p101 = scmp.ne.s32.totalorder %s90, %s91
      %p102 = scmp.eq.s32.totalorder %s21, 0
      %p103 = por %p101, %p102
      %p104 = scmp.ne.s32.totalorder %s90, %s91
      %p105 = scmp.eq.s32.totalorder %s22, 1
      %p106 = por %p104, %p105
      %p108 = scmp.ne.s32.totalorder %s91, %s107
      %p109 = scmp.eq.s32.totalorder %s22, 0
      %p110 = por %p108, %p109
      %s111 = ssub.s32 %s23, %s35
      %p112 = scmp.eq.s32.totalorder %s111, 0
      %s114 = sadd.s32 %s113, 1
      %s115 = scalar_select %p112, %s113, %s114
      %p118 = pneg %p112
      %p119 = scmp.eq.s32.totalorder %s16, 1
      %p120 = por %p118, %p119
      %p121 = scmp.ne.s32.totalorder %s113, %s116
      %p122 = scmp.eq.s32.totalorder %s16, 0
      %p123 = por %p121, %p122
      %p124 = scmp.ne.s32.totalorder %s113, %s116
      %p125 = scmp.eq.s32.totalorder %s21, 1
      %p126 = por %p124, %p125
      %p127 = scmp.ne.s32.totalorder %s116, %s117
      %p128 = scmp.eq.s32.totalorder %s21, 0
      %p129 = por %p127, %p128
      %p130 = scmp.ne.s32.totalorder %s116, %s117
      %p131 = scmp.eq.s32.totalorder %s22, 1
      %p132 = por %p130, %p131
      %p134 = scmp.ne.s32.totalorder %s117, %s133
      %p135 = scmp.eq.s32.totalorder %s22, 0
      %p136 = por %p134, %p135
      %p137 = scmp.le.s32.totalorder 1, %s16
      %p138 = scmp.lt.s32.totalorder %s16, 3
      %p139 = pnand %p137, %p138
      %p140 = pneg %p139
      // Predicated region
      $region9: #{tpu_custom_call.1} parent=5 // pred_check
        _
      $region10: #{tpu_custom_call.1} parent=5 // pred_check_branch
        %142 = sbr.rel (%p139) target = $region12
      $region11: #{tpu_custom_call.1} parent=5 // pred_region
        %s143 = ssub.s32 %s16, 1
        // Predicated region
        $region13: #{tpu_custom_call.1} parent=11 // pred_check
          %p144 = pneg %p77
        $region14: #{tpu_custom_call.1} parent=11 // pred_check_branch
          %146 = sbr.rel (%p144) target = $region16
        $region15: #{tpu_custom_call.1} parent=11 // pred_region
          _
        $region16: #{tpu_custom_call.1} parent=11 // pred_fallthru
          _
      $region12: #{tpu_custom_call.1} parent=5 // pred_fallthru
        _
      %p147 = scmp.lt.s32.totalorder %s16, 2
      // Predicated region
      $region17: #{tpu_custom_call.1} parent=5 // pred_check
        %p148 = pneg %p147
      $region18: #{tpu_custom_call.1} parent=5 // pred_check_branch
        %150 = sbr.rel (%p148) target = $region20
      $region19: #{tpu_custom_call.1} parent=5 // pred_region
        // Predicated region
        $region21: #{tpu_custom_call.1} parent=19 // pred_check
          %p151 = pneg %p50
        $region22: #{tpu_custom_call.1} parent=19 // pred_check_branch
          %153 = sbr.rel (%p151) target = $region24
        $region23: #{tpu_custom_call.1} parent=19 // pred_region
          %s154 = sadd.s32 %s23, %s24
          %s155 = smul.u32 64, %s154
          %p156 = scmp.lt.s32.totalorder %s155, 127
          %s157 = scalar_select %p156, %s155, 127
          %s158 = smul.addr %s157, 4
          %s159 = scalar_lea.vmem %s0, %s158
          %s160 = sadd.s32 %s23, %s24
          %s161 = smul.u32 64, %s160
        $region24: #{tpu_custom_call.1} parent=19 // pred_fallthru
          _
      $region20: #{tpu_custom_call.1} parent=5 // pred_fallthru
        _
      %p162 = scmp.le.s32.totalorder 1, %s16
      %p163 = scmp.lt.s32.totalorder %s16, 3
      %p164 = pnand %p162, %p163
      %p165 = pneg %p164
      // Predicated region
      $region25: #{tpu_custom_call.1} parent=5 // pred_check
        _
      $region26: #{tpu_custom_call.1} parent=5 // pred_check_branch
        %167 = sbr.rel (%p164) target = $region28
      $region27: #{tpu_custom_call.1} parent=5 // pred_region
        %s168 = ssub.s32 %s16, 1
        %s169 = sadd.s32 %s25, %s26
        %s170 = smul.u32 64, %s169
        %p171 = scmp.lt.s32.totalorder %s170, 127
        %s172 = scalar_select %p171, %s170, 127
        %s173 = smul.addr %s172, 4
        %s174 = scalar_lea.vmem %s0, %s173
        %p175 = pneg %p56
        %p176 = pneg %p53
        %p177 = pneg %p77
        %p178 = pneg %p74
        %p179 = pneg %p103
        %p180 = pneg %p100
        %s181 = sand.u32 %s90, 1
        %s182 = scalar_lea.sflag [#allocation3], %s181
        %s183 = sand.u32 %s90, 1
        %s184 = smul.addr %s183, 8
        %s185 = scalar_lea.vmem [#allocation2], %s184
        %p186 = pneg %p129
        %p187 = pneg %p126
        %s188 = sand.u32 %s116, 1
        %s189 = scalar_lea.sflag [#allocation5], %s188
        %s190 = sand.u32 %s116, 1
        %s191 = smul.addr %s190, 8
        %s192 = scalar_lea.vmem [#allocation4], %s191
        %s193 = sadd.s32 %s25, %s26
        %s194 = smul.u32 64, %s193
        %p195 = scmp.lt.s32.totalorder %s194, 127
        %s196 = scalar_select %p195, %s194, 127
        %s197 = smul.addr %s196, 4
        %s198 = scalar_lea.vmem %s0, %s197
        %s199 = sadd.s32 %s25, %s26
        %s200 = smul.u32 64, %s199
        %p202 = scmp.eq.s32.totalorder %s26, 0
        // Predicated region
        $region29: #{tpu_custom_call.1} parent=27 // pred_check
          %p203 = pneg %p202
        $region30: #{tpu_custom_call.1} parent=27 // pred_check_branch
          %205 = sbr.rel (%p203) target = $region32
        $region31: #{tpu_custom_call.1} parent=27 // pred_region
          %206 = vst [vmem:[%s185] sm:$0xff] 0.0
          %207 = vst [vmem:[%s192] sm:$0xff] 0.0
        $region32: #{tpu_custom_call.1} parent=27 // pred_fallthru
          _
        %v208 = vld [vmem:[%s198] sm:$0xf]
        %v209 = vld [vmem:[%s198 + $0x4] sm:$0xf]
        %v210 = vld [vmem:[%s198 + $0x8] sm:$0xf]
        %v211 = vld [vmem:[%s198 + $0xc] sm:$0xf]
        %v212 = vld [vmem:[%s198 + $0x10] sm:$0xf]
        %v213 = vld [vmem:[%s198 + $0x14] sm:$0xf]
        %v214 = vld [vmem:[%s198 + $0x18] sm:$0xf]
        %v215 = vld [vmem:[%s198 + $0x1c] sm:$0xf]
        %v216 = vld [vmem:[%s198 + $0x20] sm:$0xf]
        %v217 = vld [vmem:[%s198 + $0x24] sm:$0xf]
        %v218 = vld [vmem:[%s198 + $0x28] sm:$0xf]
        %v219 = vld [vmem:[%s198 + $0x2c] sm:$0xf]
        %v220 = vld [vmem:[%s198 + $0x30] sm:$0xf]
        %v221 = vld [vmem:[%s198 + $0x34] sm:$0xf]
        %v222 = vld [vmem:[%s198 + $0x38] sm:$0xf]
        %v223 = vld [vmem:[%s198 + $0x3c] sm:$0xf]
        %v224 = vld [vmem:[%s198 + $0x40] sm:$0xf]
        %v225 = vld [vmem:[%s198 + $0x44] sm:$0xf]
        %v226 = vld [vmem:[%s198 + $0x48] sm:$0xf]
        %v227 = vld [vmem:[%s198 + $0x4c] sm:$0xf]
        %v228 = vld [vmem:[%s198 + $0x50] sm:$0xf]
        %v229 = vld [vmem:[%s198 + $0x54] sm:$0xf]
        %v230 = vld [vmem:[%s198 + $0x58] sm:$0xf]
        %v231 = vld [vmem:[%s198 + $0x5c] sm:$0xf]
        %v232 = vld [vmem:[%s198 + $0x60] sm:$0xf]
        %v233 = vld [vmem:[%s198 + $0x64] sm:$0xf]
        %v234 = vld [vmem:[%s198 + $0x68] sm:$0xf]
        %v235 = vld [vmem:[%s198 + $0x6c] sm:$0xf]
        %v236 = vld [vmem:[%s198 + $0x70] sm:$0xf]
        %v237 = vld [vmem:[%s198 + $0x74] sm:$0xf]
        %v238 = vld [vmem:[%s198 + $0x78] sm:$0xf]
        %v239 = vld [vmem:[%s198 + $0x7c] sm:$0xf]
        %v240 = vld [vmem:[%s198 + $0x80] sm:$0xf]
        %v241 = vld [vmem:[%s198 + $0x84] sm:$0xf]
        %v242 = vld [vmem:[%s198 + $0x88] sm:$0xf]
        %v243 = vld [vmem:[%s198 + $0x8c] sm:$0xf]
        %v244 = vld [vmem:[%s198 + $0x90] sm:$0xf]
        %v245 = vld [vmem:[%s198 + $0x94] sm:$0xf]
        %v246 = vld [vmem:[%s198 + $0x98] sm:$0xf]
        %v247 = vld [vmem:[%s198 + $0x9c] sm:$0xf]
        %v248 = vld [vmem:[%s198 + $0xa0] sm:$0xf]
        %v249 = vld [vmem:[%s198 + $0xa4] sm:$0xf]
        %v250 = vld [vmem:[%s198 + $0xa8] sm:$0xf]
        %v251 = vld [vmem:[%s198 + $0xac] sm:$0xf]
        %v252 = vld [vmem:[%s198 + $0xb0] sm:$0xf]
        %v253 = vld [vmem:[%s198 + $0xb4] sm:$0xf]
        %v254 = vld [vmem:[%s198 + $0xb8] sm:$0xf]
        %v255 = vld [vmem:[%s198 + $0xbc] sm:$0xf]
        %v256 = vld [vmem:[%s198 + $0xc0] sm:$0xf]
        %v257 = vld [vmem:[%s198 + $0xc4] sm:$0xf]
        %v258 = vld [vmem:[%s198 + $0xc8] sm:$0xf]
        %v259 = vld [vmem:[%s198 + $0xcc] sm:$0xf]
        %v260 = vld [vmem:[%s198 + $0xd0] sm:$0xf]
        %v261 = vld [vmem:[%s198 + $0xd4] sm:$0xf]
        %v262 = vld [vmem:[%s198 + $0xd8] sm:$0xf]
        %v263 = vld [vmem:[%s198 + $0xdc] sm:$0xf]
        %v264 = vld [vmem:[%s198 + $0xe0] sm:$0xf]
        %v265 = vld [vmem:[%s198 + $0xe4] sm:$0xf]
        %v266 = vld [vmem:[%s198 + $0xe8] sm:$0xf]
        %v267 = vld [vmem:[%s198 + $0xec] sm:$0xf]
        %v268 = vld [vmem:[%s198 + $0xf0] sm:$0xf]
        %v269 = vld [vmem:[%s198 + $0xf4] sm:$0xf]
        %v270 = vld [vmem:[%s198 + $0xf8] sm:$0xf]
        %v271 = vld [vmem:[%s198 + $0xfc] sm:$0xf]
        %v272 = vld [vmem:[%s1] sm:$0xf]
        %v273 = vld [vmem:[%s1 + $0x4] sm:$0xf]
        %v274 = vld [vmem:[%s1 + $0x8] sm:$0xf]
        %v275 = vld [vmem:[%s1 + $0xc] sm:$0xf]
        %v276 = vld [vmem:[%s1 + $0x10] sm:$0xf]
        %v277 = vld [vmem:[%s1 + $0x14] sm:$0xf]
        %v278 = vld [vmem:[%s1 + $0x18] sm:$0xf]
        %v279 = vld [vmem:[%s1 + $0x1c] sm:$0xf]
        %v344 = vunpack.c.l.b16 %v208
        %v345 = vunpack.c.l.b16 %v209
        %v346 = vunpack.c.l.b16 %v210
        %v347 = vunpack.c.l.b16 %v211
        %v348 = vunpack.c.l.b16 %v212
        %v349 = vunpack.c.l.b16 %v213
        %v350 = vunpack.c.l.b16 %v214
        %v351 = vunpack.c.l.b16 %v215
        %v352 = vunpack.c.l.b16 %v216
        %v353 = vunpack.c.l.b16 %v217
        %v354 = vunpack.c.l.b16 %v218
        %v355 = vunpack.c.l.b16 %v219
        %v356 = vunpack.c.l.b16 %v220
        %v357 = vunpack.c.l.b16 %v221
        %v358 = vunpack.c.l.b16 %v222
        %v359 = vunpack.c.l.b16 %v223
        %v360 = vunpack.c.l.b16 %v224
        %v361 = vunpack.c.l.b16 %v225
        %v362 = vunpack.c.l.b16 %v226
        %v363 = vunpack.c.l.b16 %v227
        %v364 = vunpack.c.l.b16 %v228
        %v365 = vunpack.c.l.b16 %v229
        %v366 = vunpack.c.l.b16 %v230
        %v367 = vunpack.c.l.b16 %v231
        %v368 = vunpack.c.l.b16 %v232
        %v369 = vunpack.c.l.b16 %v233
        %v370 = vunpack.c.l.b16 %v234
        %v371 = vunpack.c.l.b16 %v235
        %v372 = vunpack.c.l.b16 %v236
        %v373 = vunpack.c.l.b16 %v237
        %v374 = vunpack.c.l.b16 %v238
        %v375 = vunpack.c.l.b16 %v239
        %v376 = vunpack.c.l.b16 %v240
        %v377 = vunpack.c.l.b16 %v241
        %v378 = vunpack.c.l.b16 %v242
        %v379 = vunpack.c.l.b16 %v243
        %v380 = vunpack.c.l.b16 %v244
        %v381 = vunpack.c.l.b16 %v245
        %v382 = vunpack.c.l.b16 %v246
        %v383 = vunpack.c.l.b16 %v247
        %v384 = vunpack.c.l.b16 %v248
        %v385 = vunpack.c.l.b16 %v249
        %v386 = vunpack.c.l.b16 %v250
        %v387 = vunpack.c.l.b16 %v251
        %v388 = vunpack.c.l.b16 %v252
        %v389 = vunpack.c.l.b16 %v253
        %v390 = vunpack.c.l.b16 %v254
        %v391 = vunpack.c.l.b16 %v255
        %v392 = vunpack.c.l.b16 %v256
        %v393 = vunpack.c.l.b16 %v257
        %v394 = vunpack.c.l.b16 %v258
        %v395 = vunpack.c.l.b16 %v259
        %v396 = vunpack.c.l.b16 %v260
        %v397 = vunpack.c.l.b16 %v261
        %v398 = vunpack.c.l.b16 %v262
        %v399 = vunpack.c.l.b16 %v263
        %v400 = vunpack.c.l.b16 %v264
        %v401 = vunpack.c.l.b16 %v265
        %v402 = vunpack.c.l.b16 %v266
        %v403 = vunpack.c.l.b16 %v267
        %v404 = vunpack.c.l.b16 %v268
        %v405 = vunpack.c.l.b16 %v269
        %v406 = vunpack.c.l.b16 %v270
        %v407 = vunpack.c.l.b16 %v271
        %v408 = vpack.c.b16 %v345, %v344
        %v409 = vpack.c.b16 %v347, %v346
        %v410 = vpack.c.b16 %v349, %v348
        %v411 = vpack.c.b16 %v351, %v350
        %v412 = vpack.c.b16 %v353, %v352
        %v413 = vpack.c.b16 %v355, %v354
        %v414 = vpack.c.b16 %v357, %v356
        %v415 = vpack.c.b16 %v359, %v358
        %v416 = vpack.c.b16 %v361, %v360
        %v417 = vpack.c.b16 %v363, %v362
        %v418 = vpack.c.b16 %v365, %v364
        %v419 = vpack.c.b16 %v367, %v366
        %v420 = vpack.c.b16 %v369, %v368
        %v421 = vpack.c.b16 %v371, %v370
        %v422 = vpack.c.b16 %v373, %v372
        %v423 = vpack.c.b16 %v375, %v374
        %v424 = vpack.c.b16 %v377, %v376
        %v425 = vpack.c.b16 %v379, %v378
        %v426 = vpack.c.b16 %v381, %v380
        %v427 = vpack.c.b16 %v383, %v382
        %v428 = vpack.c.b16 %v385, %v384
        %v429 = vpack.c.b16 %v387, %v386
        %v430 = vpack.c.b16 %v389, %v388
        %v431 = vpack.c.b16 %v391, %v390
        %v432 = vpack.c.b16 %v393, %v392
        %v433 = vpack.c.b16 %v395, %v394
        %v434 = vpack.c.b16 %v397, %v396
        %v435 = vpack.c.b16 %v399, %v398
        %v436 = vpack.c.b16 %v401, %v400
        %v437 = vpack.c.b16 %v403, %v402
        %v438 = vpack.c.b16 %v405, %v404
        %v439 = vpack.c.b16 %v407, %v406
        %v448 = vunpack.c.l.b16 %v272
        %v449 = vunpack.c.l.b16 %v273
        %v450 = vunpack.c.l.b16 %v274
        %v451 = vunpack.c.l.b16 %v275
        %v452 = vunpack.c.l.b16 %v276
        %v453 = vunpack.c.l.b16 %v277
        %v454 = vunpack.c.l.b16 %v278
        %v455 = vunpack.c.l.b16 %v279
        %v456 = vpack.c.b16 %v449, %v448
        %v457 = vpack.c.b16 %v451, %v450
        %v458 = vpack.c.b16 %v453, %v452
        %v459 = vpack.c.b16 %v455, %v454
        %vm464 = vcmask 523264
        %v466 = vsel %vm464, %v408, 0
        %v469 = vsel %vm464, %v409, 0
        %v472 = vsel %vm464, %v410, 0
        %v475 = vsel %vm464, %v411, 0
        %v478 = vsel %vm464, %v412, 0
        %v481 = vsel %vm464, %v413, 0
        %v484 = vsel %vm464, %v414, 0
        %v487 = vsel %vm464, %v415, 0
        %v490 = vsel %vm464, %v416, 0
        %v493 = vsel %vm464, %v417, 0
        %v496 = vsel %vm464, %v418, 0
        %v499 = vsel %vm464, %v419, 0
        %v502 = vsel %vm464, %v420, 0
        %v505 = vsel %vm464, %v421, 0
        %v508 = vsel %vm464, %v422, 0
        %v511 = vsel %vm464, %v423, 0
        %v514 = vsel %vm464, %v424, 0
        %v517 = vsel %vm464, %v425, 0
        %v520 = vsel %vm464, %v426, 0
        %v523 = vsel %vm464, %v427, 0
        %v526 = vsel %vm464, %v428, 0
        %v529 = vsel %vm464, %v429, 0
        %v532 = vsel %vm464, %v430, 0
        %v535 = vsel %vm464, %v431, 0
        %v538 = vsel %vm464, %v432, 0
        %v541 = vsel %vm464, %v433, 0
        %v544 = vsel %vm464, %v434, 0
        %v547 = vsel %vm464, %v435, 0
        %v550 = vsel %vm464, %v436, 0
        %v553 = vsel %vm464, %v437, 0
        %v556 = vsel %vm464, %v438, 0
        %v559 = vsel %vm464, %v439, 0
        %561 = vmatprep.subr.bf16.mxu0 0
        %562 = vmatpush1.bf16.msra.mxu0 %v456
        %563 = vmatprep.subr.bf16.mxu0 0
        %564 = vmatpush1.bf16.msra.mxu0 %v457
        %565 = vmatprep.subr.bf16.mxu0 0
        %566 = vmatpush1.bf16.msra.mxu0 %v458
        %567 = vmatprep.subr.bf16.mxu0 0
        %568 = vmatpush1.bf16.msra.mxu0 %v459
        %569 = vmatprep.subr.bf16.mxu0 0
        %570 = vmatpush1.bf16.msra.mxu0 0
        %571 = vmatprep.subr.bf16.mxu0 0
        %572 = vmatpush1.bf16.msra.mxu0 0
        %573 = vmatprep.subr.bf16.mxu0 0
        %574 = vmatpush1.bf16.msra.mxu0 0
        %575 = vmatprep.subr.bf16.mxu0 0
        %576 = vmatpush1.bf16.msra.mxu0 0
        %577 = vmatprep.subr.bf16.mxu0 0
        %578 = vmatpush1.bf16.msra.mxu0 0
        %579 = vmatprep.subr.bf16.mxu0 0
        %580 = vmatpush1.bf16.msra.mxu0 0
        %581 = vmatprep.subr.bf16.mxu0 0
        %582 = vmatpush1.bf16.msra.mxu0 0
        %583 = vmatprep.subr.bf16.mxu0 0
        %584 = vmatpush1.bf16.msra.mxu0 0
        %585 = vmatprep.subr.bf16.mxu0 0
        %586 = vmatpush1.bf16.msra.mxu0 0
        %587 = vmatprep.subr.bf16.mxu0 0
        %588 = vmatpush1.bf16.msra.mxu0 0
        %589 = vmatprep.subr.bf16.mxu0 0
        %590 = vmatpush1.bf16.msra.mxu0 0
        %591 = vmatprep.subr.bf16.mxu0 0
        %592 = vmatpush1.bf16.msra.mxu0 0
        %593 = vmatprep.mubr.bf16.mxu0 0
        %594 = vmatmul.mubr.bf16.gmra.mrb[0].mxu0 %v466
        %v595 = vpop.f32.mrb[0].mxu0
        %v596 = vadd.f32 0.0, %v595
        %v597 = vpop.f32.mrb[0].mxu0
        %v598 = vpop.f32.mrb[0].mxu0
        %v599 = vadd.f32 0.0, %v598
        %v600 = vpop.f32.mrb[0].mxu0
        %601 = vmatprep.mubr.bf16.mxu0 0
        %602 = vmatmul.mubr.bf16.gmra.mrb[0].mxu0 %v469
        %v603 = vpop.f32.mrb[0].mxu0
        %v604 = vadd.f32 0.0, %v603
        %v605 = vpop.f32.mrb[0].mxu0
        %v606 = vpop.f32.mrb[0].mxu0
        %v607 = vadd.f32 0.0, %v606
        %v608 = vpop.f32.mrb[0].mxu0
        %609 = vmatprep.mubr.bf16.mxu0 0
        %610 = vmatmul.mubr.bf16.gmra.mrb[0].mxu0 %v472
        %v611 = vpop.f32.mrb[0].mxu0
        %v612 = vadd.f32 0.0, %v611
        %v613 = vpop.f32.mrb[0].mxu0
        %v614 = vpop.f32.mrb[0].mxu0
        %v615 = vadd.f32 0.0, %v614
        %v616 = vpop.f32.mrb[0].mxu0
        %617 = vmatprep.mubr.bf16.mxu0 0
        %618 = vmatmul.mubr.bf16.gmra.mrb[0].mxu0 %v475
        %v619 = vpop.f32.mrb[0].mxu0
        %v620 = vadd.f32 0.0, %v619
        %v621 = vpop.f32.mrb[0].mxu0
        %v622 = vpop.f32.mrb[0].mxu0
        %v623 = vadd.f32 0.0, %v622
        %v624 = vpop.f32.mrb[0].mxu0
        %625 = vmatprep.mubr.bf16.mxu0 0
        %626 = vmatmul.mubr.bf16.gmra.mrb[0].mxu0 %v478
        %v627 = vpop.f32.mrb[0].mxu0
        %v628 = vadd.f32 0.0, %v627
        %v629 = vpop.f32.mrb[0].mxu0
        %v630 = vpop.f32.mrb[0].mxu0
        %v631 = vadd.f32 0.0, %v630
        %v632 = vpop.f32.mrb[0].mxu0
        %633 = vmatprep.mubr.bf16.mxu0 0
        %634 = vmatmul.mubr.bf16.gmra.mrb[0].mxu0 %v481
        %v635 = vpop.f32.mrb[0].mxu0
        %v636 = vadd.f32 0.0, %v635
        %v637 = vpop.f32.mrb[0].mxu0
        %v638 = vpop.f32.mrb[0].mxu0
        %v639 = vadd.f32 0.0, %v638
        %v640 = vpop.f32.mrb[0].mxu0
        %641 = vmatprep.mubr.bf16.mxu0 0
        %642 = vmatmul.mubr.bf16.gmra.mrb[0].mxu0 %v484
        %v643 = vpop.f32.mrb[0].mxu0
        %v644 = vadd.f32 0.0, %v643
        %v645 = vpop.f32.mrb[0].mxu0
        %v646 = vpop.f32.mrb[0].mxu0
        %v647 = vadd.f32 0.0, %v646
        %v648 = vpop.f32.mrb[0].mxu0
        %649 = vmatprep.mubr.bf16.mxu0 0
        %650 = vmatmul.mubr.bf16.gmra.mrb[0].mxu0 %v487
        %v651 = vpop.f32.mrb[0].mxu0
        %v652 = vadd.f32 0.0, %v651
        %v653 = vpop.f32.mrb[0].mxu0
        %v654 = vpop.f32.mrb[0].mxu0
        %v655 = vadd.f32 0.0, %v654
        %v656 = vpop.f32.mrb[0].mxu0
        %657 = vmatprep.mubr.bf16.mxu0 0
        %658 = vmatmul.mubr.bf16.gmra.mrb[0].mxu0 %v490
        %v659 = vpop.f32.mrb[0].mxu0
        %v660 = vadd.f32 0.0, %v659
        %v661 = vpop.f32.mrb[0].mxu0
        %v662 = vpop.f32.mrb[0].mxu0
        %v663 = vadd.f32 0.0, %v662
        %v664 = vpop.f32.mrb[0].mxu0
        %665 = vmatprep.mubr.bf16.mxu0 0
        %666 = vmatmul.mubr.bf16.gmra.mrb[0].mxu0 %v493
        %v667 = vpop.f32.mrb[0].mxu0
        %v668 = vadd.f32 0.0, %v667
        %v669 = vpop.f32.mrb[0].mxu0
        %v670 = vpop.f32.mrb[0].mxu0
        %v671 = vadd.f32 0.0, %v670
        %v672 = vpop.f32.mrb[0].mxu0
        %673 = vmatprep.mubr.bf16.mxu0 0
        %674 = vmatmul.mubr.bf16.gmra.mrb[0].mxu0 %v496
        %v675 = vpop.f32.mrb[0].mxu0
        %v676 = vadd.f32 0.0, %v675
        %v677 = vpop.f32.mrb[0].mxu0
        %v678 = vpop.f32.mrb[0].mxu0
        %v679 = vadd.f32 0.0, %v678
        %v680 = vpop.f32.mrb[0].mxu0
        %681 = vmatprep.mubr.bf16.mxu0 0
        %682 = vmatmul.mubr.bf16.gmra.mrb[0].mxu0 %v499
        %v683 = vpop.f32.mrb[0].mxu0
        %v684 = vadd.f32 0.0, %v683
        %v685 = vpop.f32.mrb[0].mxu0
        %v686 = vpop.f32.mrb[0].mxu0
        %v687 = vadd.f32 0.0, %v686
        %v688 = vpop.f32.mrb[0].mxu0
        %689 = vmatprep.mubr.bf16.mxu0 0
        %690 = vmatmul.mubr.bf16.gmra.mrb[0].mxu0 %v502
        %v691 = vpop.f32.mrb[0].mxu0
        %v692 = vadd.f32 0.0, %v691
        %v693 = vpop.f32.mrb[0].mxu0
        %v694 = vpop.f32.mrb[0].mxu0
        %v695 = vadd.f32 0.0, %v694
        %v696 = vpop.f32.mrb[0].mxu0
        %697 = vmatprep.mubr.bf16.mxu0 0
        %698 = vmatmul.mubr.bf16.gmra.mrb[0].mxu0 %v505
        %v699 = vpop.f32.mrb[0].mxu0
        %v700 = vadd.f32 0.0, %v699
        %v701 = vpop.f32.mrb[0].mxu0
        %v702 = vpop.f32.mrb[0].mxu0
        %v703 = vadd.f32 0.0, %v702
        %v704 = vpop.f32.mrb[0].mxu0
        %705 = vmatprep.mubr.bf16.mxu0 0
        %706 = vmatmul.mubr.bf16.gmra.mrb[0].mxu0 %v508
        %v707 = vpop.f32.mrb[0].mxu0
        %v708 = vadd.f32 0.0, %v707
        %v709 = vpop.f32.mrb[0].mxu0
        %v710 = vpop.f32.mrb[0].mxu0
        %v711 = vadd.f32 0.0, %v710
        %v712 = vpop.f32.mrb[0].mxu0
        %713 = vmatprep.mubr.bf16.mxu0 0
        %714 = vmatmul.mubr.bf16.gmra.mrb[0].mxu0 %v511
        %v715 = vpop.f32.mrb[0].mxu0
        %v716 = vadd.f32 0.0, %v715
        %v717 = vpop.f32.mrb[0].mxu0
        %v718 = vpop.f32.mrb[0].mxu0
        %v719 = vadd.f32 0.0, %v718
        %v720 = vpop.f32.mrb[0].mxu0
        %721 = vmatprep.mubr.bf16.mxu0 0
        %722 = vmatmul.mubr.bf16.gmra.mrb[0].mxu0 %v514
        %v723 = vpop.f32.mrb[0].mxu0
        %v724 = vadd.f32 0.0, %v723
        %v725 = vpop.f32.mrb[0].mxu0
        %v726 = vpop.f32.mrb[0].mxu0
        %v727 = vadd.f32 0.0, %v726
        %v728 = vpop.f32.mrb[0].mxu0
        %729 = vmatprep.mubr.bf16.mxu0 0
        %730 = vmatmul.mubr.bf16.gmra.mrb[0].mxu0 %v517
        %v731 = vpop.f32.mrb[0].mxu0
        %v732 = vadd.f32 0.0, %v731
        %v733 = vpop.f32.mrb[0].mxu0
        %v734 = vpop.f32.mrb[0].mxu0
        %v735 = vadd.f32 0.0, %v734
        %v736 = vpop.f32.mrb[0].mxu0
        %737 = vmatprep.mubr.bf16.mxu0 0
        %738 = vmatmul.mubr.bf16.gmra.mrb[0].mxu0 %v520
        %v739 = vpop.f32.mrb[0].mxu0
        %v740 = vadd.f32 0.0, %v739
        %v741 = vpop.f32.mrb[0].mxu0
        %v742 = vpop.f32.mrb[0].mxu0
        %v743 = vadd.f32 0.0, %v742
        %v744 = vpop.f32.mrb[0].mxu0
        %745 = vmatprep.mubr.bf16.mxu0 0
        %746 = vmatmul.mubr.bf16.gmra.mrb[0].mxu0 %v523
        %v747 = vpop.f32.mrb[0].mxu0
        %v748 = vadd.f32 0.0, %v747
        %v749 = vpop.f32.mrb[0].mxu0
        %v750 = vpop.f32.mrb[0].mxu0
        %v751 = vadd.f32 0.0, %v750
        %v752 = vpop.f32.mrb[0].mxu0
        %753 = vmatprep.mubr.bf16.mxu0 0
        %754 = vmatmul.mubr.bf16.gmra.mrb[0].mxu0 %v526
        %v755 = vpop.f32.mrb[0].mxu0
        %v756 = vadd.f32 0.0, %v755
        %v757 = vpop.f32.mrb[0].mxu0
        %v758 = vpop.f32.mrb[0].mxu0
        %v759 = vadd.f32 0.0, %v758
        %v760 = vpop.f32.mrb[0].mxu0
        %761 = vmatprep.mubr.bf16.mxu0 0
        %762 = vmatmul.mubr.bf16.gmra.mrb[0].mxu0 %v529
        %v763 = vpop.f32.mrb[0].mxu0
        %v764 = vadd.f32 0.0, %v763
        %v765 = vpop.f32.mrb[0].mxu0
        %v766 = vpop.f32.mrb[0].mxu0
        %v767 = vadd.f32 0.0, %v766
        %v768 = vpop.f32.mrb[0].mxu0
        %769 = vmatprep.mubr.bf16.mxu0 0
        %770 = vmatmul.mubr.bf16.gmra.mrb[0].mxu0 %v532
        %v771 = vpop.f32.mrb[0].mxu0
        %v772 = vadd.f32 0.0, %v771
        %v773 = vpop.f32.mrb[0].mxu0
        %v774 = vpop.f32.mrb[0].mxu0
        %v775 = vadd.f32 0.0, %v774
        %v776 = vpop.f32.mrb[0].mxu0
        %777 = vmatprep.mubr.bf16.mxu0 0
        %778 = vmatmul.mubr.bf16.gmra.mrb[0].mxu0 %v535
        %v779 = vpop.f32.mrb[0].mxu0
        %v780 = vadd.f32 0.0, %v779
        %v781 = vpop.f32.mrb[0].mxu0
        %v782 = vpop.f32.mrb[0].mxu0
        %v783 = vadd.f32 0.0, %v782
        %v784 = vpop.f32.mrb[0].mxu0
        %785 = vmatprep.mubr.bf16.mxu0 0
        %786 = vmatmul.mubr.bf16.gmra.mrb[0].mxu0 %v538
        %v787 = vpop.f32.mrb[0].mxu0
        %v788 = vadd.f32 0.0, %v787
        %v789 = vpop.f32.mrb[0].mxu0
        %v790 = vpop.f32.mrb[0].mxu0
        %v791 = vadd.f32 0.0, %v790
        %v792 = vpop.f32.mrb[0].mxu0
        %793 = vmatprep.mubr.bf16.mxu0 0
        %794 = vmatmul.mubr.bf16.gmra.mrb[0].mxu0 %v541
        %v795 = vpop.f32.mrb[0].mxu0
        %v796 = vadd.f32 0.0, %v795
        %v797 = vpop.f32.mrb[0].mxu0
        %v798 = vpop.f32.mrb[0].mxu0
        %v799 = vadd.f32 0.0, %v798
        %v800 = vpop.f32.mrb[0].mxu0
        %801 = vmatprep.mubr.bf16.mxu0 0
        %802 = vmatmul.mubr.bf16.gmra.mrb[0].mxu0 %v544
        %v803 = vpop.f32.mrb[0].mxu0
        %v804 = vadd.f32 0.0, %v803
        %v805 = vpop.f32.mrb[0].mxu0
        %v806 = vpop.f32.mrb[0].mxu0
        %v807 = vadd.f32 0.0, %v806
        %v808 = vpop.f32.mrb[0].mxu0
        %809 = vmatprep.mubr.bf16.mxu0 0
        %810 = vmatmul.mubr.bf16.gmra.mrb[0].mxu0 %v547
        %v811 = vpop.f32.mrb[0].mxu0
        %v812 = vadd.f32 0.0, %v811
        %v813 = vpop.f32.mrb[0].mxu0
        %v814 = vpop.f32.mrb[0].mxu0
        %v815 = vadd.f32 0.0, %v814
        %v816 = vpop.f32.mrb[0].mxu0
        %817 = vmatprep.mubr.bf16.mxu0 0
        %818 = vmatmul.mubr.bf16.gmra.mrb[0].mxu0 %v550
        %v819 = vpop.f32.mrb[0].mxu0
        %v820 = vadd.f32 0.0, %v819
        %v821 = vpop.f32.mrb[0].mxu0
        %v822 = vpop.f32.mrb[0].mxu0
        %v823 = vadd.f32 0.0, %v822
        %v824 = vpop.f32.mrb[0].mxu0
        %825 = vmatprep.mubr.bf16.mxu0 0
        %826 = vmatmul.mubr.bf16.gmra.mrb[0].mxu0 %v553
        %v827 = vpop.f32.mrb[0].mxu0
        %v828 = vadd.f32 0.0, %v827
        %v829 = vpop.f32.mrb[0].mxu0
        %v830 = vpop.f32.mrb[0].mxu0
        %v831 = vadd.f32 0.0, %v830
        %v832 = vpop.f32.mrb[0].mxu0
        %833 = vmatprep.mubr.bf16.mxu0 0
        %834 = vmatmul.mubr.bf16.gmra.mrb[0].mxu0 %v556
        %v835 = vpop.f32.mrb[0].mxu0
        %v836 = vadd.f32 0.0, %v835
        %v837 = vpop.f32.mrb[0].mxu0
        %v838 = vpop.f32.mrb[0].mxu0
        %v839 = vadd.f32 0.0, %v838
        %v840 = vpop.f32.mrb[0].mxu0
        %841 = vmatprep.mubr.bf16.mxu0 0
        %842 = vmatmul.mubr.bf16.gmra.mrb[0].mxu0 %v559
        %v843 = vpop.f32.mrb[0].mxu0
        %v844 = vadd.f32 0.0, %v843
        %v845 = vpop.f32.mrb[0].mxu0
        %v846 = vpop.f32.mrb[0].mxu0
        %v847 = vadd.f32 0.0, %v846
        %v848 = vpop.f32.mrb[0].mxu0
        %849 = vdwg.mxu0
        %v850 = vld [vmem:[%s185] sm:$0xff]
        %v851 = vadd.f32 %v596, %v599
        %v852 = vadd.f32 %v851, %v604
        %v853 = vadd.f32 %v852, %v607
        %v854 = vadd.f32 %v853, %v612
        %v855 = vadd.f32 %v854, %v615
        %v856 = vadd.f32 %v855, %v620
        %v857 = vadd.f32 %v856, %v623
        %v858 = vadd.f32 %v857, %v628
        %v859 = vadd.f32 %v858, %v631
        %v860 = vadd.f32 %v859, %v636
        %v861 = vadd.f32 %v860, %v639
        %v862 = vadd.f32 %v861, %v644
        %v863 = vadd.f32 %v862, %v647
        %v864 = vadd.f32 %v863, %v652
        %v865 = vadd.f32 %v864, %v655
        %v866 = vadd.f32 %v865, %v660
        %v867 = vadd.f32 %v866, %v663
        %v868 = vadd.f32 %v867, %v668
        %v869 = vadd.f32 %v868, %v671
        %v870 = vadd.f32 %v869, %v676
        %v871 = vadd.f32 %v870, %v679
        %v872 = vadd.f32 %v871, %v684
        %v873 = vadd.f32 %v872, %v687
        %v874 = vadd.f32 %v873, %v692
        %v875 = vadd.f32 %v874, %v695
        %v876 = vadd.f32 %v875, %v700
        %v877 = vadd.f32 %v876, %v703
        %v878 = vadd.f32 %v877, %v708
        %v879 = vadd.f32 %v878, %v711
        %v880 = vadd.f32 %v879, %v716
        %v881 = vadd.f32 %v880, %v719
        %v882 = vadd.f32 %v881, %v724
        %v883 = vadd.f32 %v882, %v727
        %v884 = vadd.f32 %v883, %v732
        %v885 = vadd.f32 %v884, %v735
        %v886 = vadd.f32 %v885, %v740
        %v887 = vadd.f32 %v886, %v743
        %v888 = vadd.f32 %v887, %v748
        %v889 = vadd.f32 %v888, %v751
        %v890 = vadd.f32 %v889, %v756
        %v891 = vadd.f32 %v890, %v759
        %v892 = vadd.f32 %v891, %v764
        %v893 = vadd.f32 %v892, %v767
        %v894 = vadd.f32 %v893, %v772
        %v895 = vadd.f32 %v894, %v775
        %v896 = vadd.f32 %v895, %v780
        %v897 = vadd.f32 %v896, %v783
        %v898 = vadd.f32 %v897, %v788
        %v899 = vadd.f32 %v898, %v791
        %v900 = vadd.f32 %v899, %v796
        %v901 = vadd.f32 %v900, %v799
        %v902 = vadd.f32 %v901, %v804
        %v903 = vadd.f32 %v902, %v807
        %v904 = vadd.f32 %v903, %v812
        %v905 = vadd.f32 %v904, %v815
        %v906 = vadd.f32 %v905, %v820
        %v907 = vadd.f32 %v906, %v823
        %v908 = vadd.f32 %v907, %v828
        %v909 = vadd.f32 %v908, %v831
        %v910 = vadd.f32 %v909, %v836
        %v911 = vadd.f32 %v910, %v839
        %v912 = vadd.f32 %v911, %v844
        %v913 = vadd.f32 %v912, %v847
        %v914 = vadd.f32 %v850, %v913
        %915 = vst [vmem:[%s185] sm:$0xff] %v914
        %v916 = vld [vmem:[%s192] sm:$0xff]
        %v917 = vmul.f32 %v596, %v596
        %v918 = vmul.f32 %v599, %v599
        %v919 = vmul.f32 %v604, %v604
        %v920 = vmul.f32 %v607, %v607
        %v921 = vmul.f32 %v612, %v612
        %v922 = vmul.f32 %v615, %v615
        %v923 = vmul.f32 %v620, %v620
        %v924 = vmul.f32 %v623, %v623
        %v925 = vmul.f32 %v628, %v628
        %v926 = vmul.f32 %v631, %v631
        %v927 = vmul.f32 %v636, %v636
        %v928 = vmul.f32 %v639, %v639
        %v929 = vmul.f32 %v644, %v644
        %v930 = vmul.f32 %v647, %v647
        %v931 = vmul.f32 %v652, %v652
        %v932 = vmul.f32 %v655, %v655
        %v933 = vmul.f32 %v660, %v660
        %v934 = vmul.f32 %v663, %v663
        %v935 = vmul.f32 %v668, %v668
        %v936 = vmul.f32 %v671, %v671
        %v937 = vmul.f32 %v676, %v676
        %v938 = vmul.f32 %v679, %v679
        %v939 = vmul.f32 %v684, %v684
        %v940 = vmul.f32 %v687, %v687
        %v941 = vmul.f32 %v692, %v692
        %v942 = vmul.f32 %v695, %v695
        %v943 = vmul.f32 %v700, %v700
        %v944 = vmul.f32 %v703, %v703
        %v945 = vmul.f32 %v708, %v708
        %v946 = vmul.f32 %v711, %v711
        %v947 = vmul.f32 %v716, %v716
        %v948 = vmul.f32 %v719, %v719
        %v949 = vmul.f32 %v724, %v724
        %v950 = vmul.f32 %v727, %v727
        %v951 = vmul.f32 %v732, %v732
        %v952 = vmul.f32 %v735, %v735
        %v953 = vmul.f32 %v740, %v740
        %v954 = vmul.f32 %v743, %v743
        %v955 = vmul.f32 %v748, %v748
        %v956 = vmul.f32 %v751, %v751
        %v957 = vmul.f32 %v756, %v756
        %v958 = vmul.f32 %v759, %v759
        %v959 = vmul.f32 %v764, %v764
        %v960 = vmul.f32 %v767, %v767
        %v961 = vmul.f32 %v772, %v772
        %v962 = vmul.f32 %v775, %v775
        %v963 = vmul.f32 %v780, %v780
        %v964 = vmul.f32 %v783, %v783
        %v965 = vmul.f32 %v788, %v788
        %v966 = vmul.f32 %v791, %v791
        %v967 = vmul.f32 %v796, %v796
        %v968 = vmul.f32 %v799, %v799
        %v969 = vmul.f32 %v804, %v804
        %v970 = vmul.f32 %v807, %v807
        %v971 = vmul.f32 %v812, %v812
        %v972 = vmul.f32 %v815, %v815
        %v973 = vmul.f32 %v820, %v820
        %v974 = vmul.f32 %v823, %v823
        %v975 = vmul.f32 %v828, %v828
        %v976 = vmul.f32 %v831, %v831
        %v977 = vmul.f32 %v836, %v836
        %v978 = vmul.f32 %v839, %v839
        %v979 = vmul.f32 %v844, %v844
        %v980 = vmul.f32 %v847, %v847
        %v981 = vadd.f32 %v917, %v918
        %v982 = vadd.f32 %v981, %v919
        %v983 = vadd.f32 %v982, %v920
        %v984 = vadd.f32 %v983, %v921
        %v985 = vadd.f32 %v984, %v922
        %v986 = vadd.f32 %v985, %v923
        %v987 = vadd.f32 %v986, %v924
        %v988 = vadd.f32 %v987, %v925
        %v989 = vadd.f32 %v988, %v926
        %v990 = vadd.f32 %v989, %v927
        %v991 = vadd.f32 %v990, %v928
        %v992 = vadd.f32 %v991, %v929
        %v993 = vadd.f32 %v992, %v930
        %v994 = vadd.f32 %v993, %v931
        %v995 = vadd.f32 %v994, %v932
        %v996 = vadd.f32 %v995, %v933
        %v997 = vadd.f32 %v996, %v934
        %v998 = vadd.f32 %v997, %v935
        %v999 = vadd.f32 %v998, %v936
        %v1000 = vadd.f32 %v999, %v937
        %v1001 = vadd.f32 %v1000, %v938
        %v1002 = vadd.f32 %v1001, %v939
        %v1003 = vadd.f32 %v1002, %v940
        %v1004 = vadd.f32 %v1003, %v941
        %v1005 = vadd.f32 %v1004, %v942
        %v1006 = vadd.f32 %v1005, %v943
        %v1007 = vadd.f32 %v1006, %v944
        %v1008 = vadd.f32 %v1007, %v945
        %v1009 = vadd.f32 %v1008, %v946
        %v1010 = vadd.f32 %v1009, %v947
        %v1011 = vadd.f32 %v1010, %v948
        %v1012 = vadd.f32 %v1011, %v949
        %v1013 = vadd.f32 %v1012, %v950
        %v1014 = vadd.f32 %v1013, %v951
        %v1015 = vadd.f32 %v1014, %v952
        %v1016 = vadd.f32 %v1015, %v953
        %v1017 = vadd.f32 %v1016, %v954
        %v1018 = vadd.f32 %v1017, %v955
        %v1019 = vadd.f32 %v1018, %v956
        %v1020 = vadd.f32 %v1019, %v957
        %v1021 = vadd.f32 %v1020, %v958
        %v1022 = vadd.f32 %v1021, %v959
        %v1023 = vadd.f32 %v1022, %v960
        %v1024 = vadd.f32 %v1023, %v961
        %v1025 = vadd.f32 %v1024, %v962
        %v1026 = vadd.f32 %v1025, %v963
        %v1027 = vadd.f32 %v1026, %v964
        %v1028 = vadd.f32 %v1027, %v965
        %v1029 = vadd.f32 %v1028, %v966
        %v1030 = vadd.f32 %v1029, %v967
        %v1031 = vadd.f32 %v1030, %v968
        %v1032 = vadd.f32 %v1031, %v969
        %v1033 = vadd.f32 %v1032, %v970
        %v1034 = vadd.f32 %v1033, %v971
        %v1035 = vadd.f32 %v1034, %v972
        %v1036 = vadd.f32 %v1035, %v973
        %v1037 = vadd.f32 %v1036, %v974
        %v1038 = vadd.f32 %v1037, %v975
        %v1039 = vadd.f32 %v1038, %v976
        %v1040 = vadd.f32 %v1039, %v977
        %v1041 = vadd.f32 %v1040, %v978
        %v1042 = vadd.f32 %v1041, %v979
        %v1043 = vadd.f32 %v1042, %v980
        %v1044 = vadd.f32 %v916, %v1043
        %1045 = vst [vmem:[%s192] sm:$0xff] %v1044
        %s1046 = sand.u32 %s90, 1
        %s1047 = scalar_lea.sflag [#allocation3], %s1046
        %s1048 = sand.u32 %s90, 1
        %s1049 = smul.addr %s1048, 8
        %s1050 = scalar_lea.vmem [#allocation2], %s1049
        %s1051 = sand.u32 %s116, 1
        %s1052 = scalar_lea.sflag [#allocation5], %s1051
        %s1053 = sand.u32 %s116, 1
        %s1054 = smul.addr %s1053, 8
        %s1055 = scalar_lea.vmem [#allocation4], %s1054
        // Predicated region
        $region33: #{tpu_custom_call.1} parent=27 // pred_check
          %p1056 = pneg %p100
        $region34: #{tpu_custom_call.1} parent=27 // pred_check_branch
          %1058 = sbr.rel (%p1056) target = $region36
        $region35: #{tpu_custom_call.1} parent=27 // pred_region
          %s1060 = ssub.s32 128, 128
          %1061 = vsyncadd %s1047, %s1060
          %s1062 = smul.addr %s25, 128
          %s1063 = scalar_lea.hbm %s2, %s1062
          %s1065 = sshll.u32 %s1050, 4
          %s1066 = int_to_ptr.vmem [resolvable:$true] %s1065
          %1068 = dma.vmem_to_hbm [thread:$0]  %s1066, 128, %s1063, %s1047
        $region36: #{tpu_custom_call.1} parent=27 // pred_fallthru
          _
        // Predicated region
        $region37: #{tpu_custom_call.1} parent=27 // pred_check
          %p1069 = pneg %p126
        $region38: #{tpu_custom_call.1} parent=27 // pred_check_branch
          %1071 = sbr.rel (%p1069) target = $region40
        $region39: #{tpu_custom_call.1} parent=27 // pred_region
          %s1073 = ssub.s32 128, 128
          %1074 = vsyncadd %s1052, %s1073
          %s1075 = smul.addr %s25, 128
          %s1076 = scalar_lea.hbm %s3, %s1075
          %s1078 = sshll.u32 %s1055, 4
          %s1079 = int_to_ptr.vmem [resolvable:$true] %s1078
          %1081 = dma.vmem_to_hbm [thread:$0]  %s1079, 128, %s1076, %s1052
        $region40: #{tpu_custom_call.1} parent=27 // pred_fallthru
          _
      $region28: #{tpu_custom_call.1} parent=5 // pred_fallthru
        _
      %p1082 = scmp.le.s32.totalorder 2, %s16
      // Predicated region
      $region41: #{tpu_custom_call.1} parent=5 // pred_check
        %p1083 = pneg %p1082
      $region42: #{tpu_custom_call.1} parent=5 // pred_check_branch
        %1085 = sbr.rel (%p1083) target = $region44
      $region43: #{tpu_custom_call.1} parent=5 // pred_region
        %s1086 = ssub.s32 %s16, 2
        // Predicated region
        $region45: #{tpu_custom_call.1} parent=43 // pred_check
          %p1087 = pneg %p106
        $region46: #{tpu_custom_call.1} parent=43 // pred_check_branch
          %1089 = sbr.rel (%p1087) target = $region48
        $region47: #{tpu_custom_call.1} parent=43 // pred_region
          %s1090 = sand.u32 %s91, 1
          %s1091 = scalar_lea.sflag [#allocation3], %s1090
          %s1092 = sand.u32 %s91, 1
          %s1093 = smul.addr %s1092, 8
          %s1094 = scalar_lea.vmem [#allocation2], %s1093
          %1095 = dma.done %s1091, 128
        $region48: #{tpu_custom_call.1} parent=43 // pred_fallthru
          _
        // Predicated region
        $region49: #{tpu_custom_call.1} parent=43 // pred_check
          %p1096 = pneg %p132
        $region50: #{tpu_custom_call.1} parent=43 // pred_check_branch
          %1098 = sbr.rel (%p1096) target = $region52
        $region51: #{tpu_custom_call.1} parent=43 // pred_region
          %s1099 = sand.u32 %s117, 1
          %s1100 = scalar_lea.sflag [#allocation5], %s1099
          %s1101 = sand.u32 %s117, 1
          %s1102 = smul.addr %s1101, 8
          %s1103 = scalar_lea.vmem [#allocation4], %s1102
          %1104 = dma.done %s1100, 128
        $region52: #{tpu_custom_call.1} parent=43 // pred_fallthru
          _
      $region44: #{tpu_custom_call.1} parent=5 // pred_fallthru
        _
    $region6: #{tpu_custom_call.1} parent=1 // loop_footer
      %s20 = sadd.s32 1, %s16
    $region7: #{tpu_custom_call.1} parent=1 // loop_footer_branch
      %15 = sbr.rel target = $region3
    $region8: #{tpu_custom_call.1} parent=1 // loop_exit
      _
    %1105 = vsyncpa [#allocation3], 1
    %s1106 = scalar_lea.sflag [#allocation3], 1
    %1107 = vsyncpa %s1106, 1
    %1108 = vsyncpa [#allocation5], 1
    %s1109 = scalar_lea.sflag [#allocation5], 1
    %1110 = vsyncpa %s1109, 1

</llo_original>
